<compile_context>
chip_gen: v5e
topology: v5e:2x2
jax: 0.10.0
libtpu: 0.0.40
codegen_flags: <defaults>
</compile_context>

<pallas_src>
import functools

import jax
import jax.numpy as jnp
from jax.experimental import pallas as pl
from jax.experimental.pallas import tpu as pltpu

block_size = 256
n_embed = 384


def _pick_batch_tile(B, max_bt=8):
    """Largest divisor of B that is <= max_bt, keeping >= 2 grid steps when B >= 2
    (so both TensorCores on v7x get work)."""
    best = 1
    for bt in range(1, min(B, max_bt) + 1):
        if B % bt == 0 and (B == 1 or B // bt >= 2):
            best = bt
    return best


def _head_kernel(x_ref, wqkv_ref, o_ref, *, scale, head_size):
    # x_ref block: (Bt, T, C);  wqkv_ref: (C, 3H);  o_ref block: (Bt, T, H)
    bt, T, C = x_ref.shape
    H = head_size

    # Fused QKV projection: one wide bf16 matmul, f32 accumulation.
    x2d = x_ref[...].reshape(bt * T, C).astype(jnp.bfloat16)        # (Bt*T, C)
    wqkv = wqkv_ref[...].astype(jnp.bfloat16)                       # (C, 3H)
    qkv = jnp.dot(x2d, wqkv, preferred_element_type=jnp.float32)    # (Bt*T, 3H) f32

    k = qkv[:, 0 * H:1 * H].reshape(bt, T, H)                       # (Bt, T, H) f32
    q = qkv[:, 1 * H:2 * H].reshape(bt, T, H)
    v = qkv[:, 2 * H:3 * H].reshape(bt, T, H)

    # Fold C**-0.5 into q (T*H elements instead of T*T), then bf16 for the MXU.
    q_bf = (q * scale).astype(jnp.bfloat16)
    k_bf = k.astype(jnp.bfloat16)

    # Scores: batched contraction on the head dim — no explicit k transpose.
    s = jnp.einsum("btd,bsd->bts", q_bf, k_bf,
                   preferred_element_type=jnp.float32)              # (Bt, T, T) f32

    # Causal mask (tril): keep col <= row, else -inf. Built once per grid step.
    row = jax.lax.broadcasted_iota(jnp.int32, (T, T), 0)
    col = jax.lax.broadcasted_iota(jnp.int32, (T, T), 1)
    causal = (col <= row)[None, :, :]                               # (1, T, T)
    s = jnp.where(causal, s, -jnp.inf)

    # Numerically stable softmax; reciprocal goes to the (otherwise idle) EUP.
    s = s - jnp.max(s, axis=-1, keepdims=True)
    p = jnp.exp(s)
    denom = jnp.sum(p, axis=-1, keepdims=True)
    p = p * pl.reciprocal(denom, approx=True)

    # Weighted sum of values: bf16 operands, f32 accumulation.
    out = jnp.einsum("bts,bsd->btd", p.astype(jnp.bfloat16), v.astype(jnp.bfloat16),
                     preferred_element_type=jnp.float32)            # (Bt, T, H)
    o_ref[...] = out.astype(o_ref.dtype)


def head_forward(x, wk, wq, wv, *, batch_tile=None):
    """x: (B, T, C) f32; wk/wq/wv: (C, H) f32  ->  (B, T, H) f32."""
    B, T, C = x.shape
    H = wk.shape[1]
    scale = float(C) ** -0.5  # matches PyTorch source: C ** (-0.5) with C = n_embed

    # Fuse the three projection weights into a single (C, 3H) operand.
    wqkv = jnp.concatenate([wk, wq, wv], axis=1)

    bt = batch_tile if batch_tile is not None else _pick_batch_tile(B)
    assert B % bt == 0, (B, bt)

    kernel = functools.partial(_head_kernel, scale=scale, head_size=H)

    return pl.pallas_call(
        kernel,
        out_shape=jax.ShapeDtypeStruct((B, T, H), x.dtype),
        grid_spec=pltpu.PrefetchScalarGridSpec(
            num_scalar_prefetch=0,
            grid=(B // bt,),
            in_specs=[
                pl.BlockSpec((bt, T, C), lambda b: (b, 0, 0)),    # x: Bt batches per step
                pl.BlockSpec((C, 3 * H), lambda b: (0, 0)),        # fused Wqkv (resident)
            ],
            out_specs=pl.BlockSpec((bt, T, H), lambda b: (b, 0, 0)),
        ),
        compiler_params=pltpu.CompilerParams(
            dimension_semantics=("parallel",),
        ),
    )(x, wqkv)


def head_reference(x, wk, wq, wv):
    """Pure-JAX f32 reference of the PyTorch forward (dropout in eval mode)."""
    B, T, C = x.shape
    k = x @ wk
    q = x @ wq
    v = x @ wv
    s = jnp.einsum("btd,bsd->bts", q, k) * (float(C) ** -0.5)
    mask = jnp.tril(jnp.ones((T, T), dtype=bool))
    s = jnp.where(mask, s, -jnp.inf)
    p = jax.nn.softmax(s, axis=-1)
    return p @ v


if __name__ == "__main__":
    # Small, module-consistent shapes: B=2, T=8 (<= block_size), C=n_embed=384, head_size=64
    B, T, C, H = 2, 8, n_embed, 64

    key = jax.random.PRNGKey(0)
    kx, kk, kq, kv = jax.random.split(key, 4)
    x = jax.random.normal(kx, (B, T, C), dtype=jnp.float32)
    # nn.Linear weight init ~ U(-1/sqrt(fan_in), 1/sqrt(fan_in)); stored transposed (C, H)
    bound = 1.0 / (C ** 0.5)
    wk = jax.random.uniform(kk, (C, H), minval=-bound, maxval=bound, dtype=jnp.float32)
    wq = jax.random.uniform(kq, (C, H), minval=-bound, maxval=bound, dtype=jnp.float32)
    wv = jax.random.uniform(kv, (C, H), minval=-bound, maxval=bound, dtype=jnp.float32)

    out = head_forward(x, wk, wq, wv)
    out = jax.block_until_ready(out)

    ref = head_reference(x, wk, wq, wv)
    assert out.shape == (B, T, H), out.shape
    # Tolerance loosened vs. pure-f32: the kernel uses bf16 MXU operands with f32 accumulation.
    max_err = float(jnp.max(jnp.abs(out - ref)))
    assert jnp.allclose(out, ref, atol=3e-2, rtol=3e-2), max_err

    print("KERNEL_OK")
</pallas_src>

<mosaic_0001>
module attributes {stable_mosaic.version = 11 : i64} {
  func.func @_head_kernel(%arg0: i32, %arg1: memref<1x8x384xf32, #tpu.memory_space<vmem>>, %arg2: memref<384x192xf32, #tpu.memory_space<vmem>>, %arg3: memref<1x8x64xf32, #tpu.memory_space<vmem>>) attributes {dimension_semantics = [#tpu.dimension_semantics<parallel>], iteration_bounds = array<i64: 2>, scalar_prefetch = 0 : i64, scratch_operands = 0 : i64, tpu.core_type = #tpu.core_type<tc>, window_params = [{transform_indices = @transform_0, window_bounds = array<i64: 1, 8, 384>}, {pipeline_mode = #tpu.pipeline_mode<synchronous>, transform_indices = @transform_1, window_bounds = array<i64: 384, 192>}, {transform_indices = @transform_2, window_bounds = array<i64: 1, 8, 64>}]} {
    %c0 = arith.constant 0 : index
    %c0_0 = arith.constant 0 : index
    %c0_1 = arith.constant 0 : index
    %0 = vector.load %arg1[%c0, %c0_0, %c0_1] : memref<1x8x384xf32, #tpu.memory_space<vmem>>, vector<1x8x384xf32>
    %1 = vector.shape_cast %0 : vector<1x8x384xf32> to vector<8x384xf32>
    %2 = arith.truncf %1 : vector<8x384xf32> to vector<8x384xbf16>
    %c0_2 = arith.constant 0 : index
    %c0_3 = arith.constant 0 : index
    %3 = vector.load %arg2[%c0_2, %c0_3] : memref<384x192xf32, #tpu.memory_space<vmem>>, vector<384x192xf32>
    %4 = arith.truncf %3 : vector<384x192xf32> to vector<384x192xbf16>
    %cst = arith.constant dense<0.000000e+00> : vector<8x192xf32>
    %5 = tpu.matmul %2, %4, %cst {dimension_numbers = #tpu.dot_dimension_numbers<[1], [0], [0], [1], [0, 0, 1, 1], [], []>} : vector<8x384xbf16>, vector<384x192xbf16>, vector<8x192xf32> -> vector<8x192xf32>
    %6 = vector.extract_strided_slice %5 {offsets = [0, 0], sizes = [8, 64], strides = [1, 1]} : vector<8x192xf32> to vector<8x64xf32>
    %7 = vector.shape_cast %6 : vector<8x64xf32> to vector<1x8x64xf32>
    %8 = vector.extract_strided_slice %5 {offsets = [0, 64], sizes = [8, 64], strides = [1, 1]} : vector<8x192xf32> to vector<8x64xf32>
    %9 = vector.shape_cast %8 : vector<8x64xf32> to vector<1x8x64xf32>
    %10 = vector.extract_strided_slice %5 {offsets = [0, 128], sizes = [8, 64], strides = [1, 1]} : vector<8x192xf32> to vector<8x64xf32>
    %11 = vector.shape_cast %10 : vector<8x64xf32> to vector<1x8x64xf32>
    %cst_4 = arith.constant 0.0510310382 : f32
    %12 = vector.broadcast %cst_4 : f32 to vector<1x8x64xf32>
    %13 = arith.mulf %9, %12 : vector<1x8x64xf32>
    %14 = arith.truncf %13 : vector<1x8x64xf32> to vector<1x8x64xbf16>
    %15 = arith.truncf %7 : vector<1x8x64xf32> to vector<1x8x64xbf16>
    "tpu.trace_start"() <{level = 10 : i32, message = "btd,bsd->bts"}> : () -> ()
    %cst_5 = arith.constant dense<0.000000e+00> : vector<1x8x8xf32>
    %16 = tpu.matmul %14, %15, %cst_5 {dimension_numbers = #tpu.dot_dimension_numbers<[2], [2], [1], [1], [0, 0, 0, 1, 1, 1], [0], [0]>} : vector<1x8x64xbf16>, vector<1x8x64xbf16>, vector<1x8x8xf32> -> vector<1x8x8xf32>
    "tpu.trace_stop"() : () -> ()
    %17 = tpu.iota {dimensions = array<i32: 0>} : vector<8x8xi32>
    %18 = tpu.iota {dimensions = array<i32: 1>} : vector<8x8xi32>
    %19 = arith.cmpi sle, %18, %17 : vector<8x8xi32>
    %20 = vector.shape_cast %19 : vector<8x8xi1> to vector<1x8x8xi1>
    %cst_6 = arith.constant 0xFF800000 : f32
    %21 = vector.broadcast %cst_6 : f32 to vector<1x8x8xf32>
    %22 = arith.select %20, %16, %21 : vector<1x8x8xi1>, vector<1x8x8xf32>
    %cst_7 = arith.constant dense<0xFF800000> : vector<1x8xf32>
    %23 = vector.multi_reduction <maximumf>, %22, %cst_7 [2] : vector<1x8x8xf32> to vector<1x8xf32>
    %24 = vector.shape_cast %23 : vector<1x8xf32> to vector<1x8x1xf32>
    %25 = vector.broadcast %24 : vector<1x8x1xf32> to vector<1x8x8xf32>
    %26 = arith.subf %22, %25 : vector<1x8x8xf32>
    %27 = math.exp %26 : vector<1x8x8xf32>
    %cst_8 = arith.constant dense<0.000000e+00> : vector<1x8xf32>
    %28 = vector.multi_reduction <add>, %27, %cst_8 [2] : vector<1x8x8xf32> to vector<1x8xf32>
    %29 = vector.shape_cast %28 : vector<1x8xf32> to vector<1x8x1xf32>
    %30 = tpu.reciprocal %29 {approx = true} : vector<1x8x1xf32> -> vector<1x8x1xf32>
    %31 = vector.broadcast %30 : vector<1x8x1xf32> to vector<1x8x8xf32>
    %32 = arith.mulf %27, %31 : vector<1x8x8xf32>
    %33 = arith.truncf %32 : vector<1x8x8xf32> to vector<1x8x8xbf16>
    %34 = arith.truncf %11 : vector<1x8x64xf32> to vector<1x8x64xbf16>
    "tpu.trace_start"() <{level = 10 : i32, message = "bts,bsd->btd"}> : () -> ()
    %cst_9 = arith.constant dense<0.000000e+00> : vector<1x8x64xf32>
    %35 = tpu.matmul %33, %34, %cst_9 {dimension_numbers = #tpu.dot_dimension_numbers<[2], [1], [1], [2], [0, 0, 0, 1, 1, 2], [0], [0]>} : vector<1x8x8xbf16>, vector<1x8x64xbf16>, vector<1x8x64xf32> -> vector<1x8x64xf32>
    "tpu.trace_stop"() : () -> ()
    %c0_10 = arith.constant 0 : index
    %c0_11 = arith.constant 0 : index
    %c0_12 = arith.constant 0 : index
    %36 = vector.load %arg3[%c0_10, %c0_11, %c0_12] : memref<1x8x64xf32, #tpu.memory_space<vmem>>, vector<1x8x64xf32>
    tpu.vector_store %arg3[%c0_10, %c0_11, %c0_12], %35 {strides = array<i32>} : memref<1x8x64xf32, #tpu.memory_space<vmem>>, vector<1x8x64xf32>,
    return
  }
  func.func @transform_0(%arg0: i32) -> (i32, i32, i32) {
    %c0_i32 = arith.constant 0 : i32
    %c0_i32_0 = arith.constant 0 : i32
    %c0_i32_1 = arith.constant 0 : i32
    return %arg0, %c0_i32, %c0_i32_0 : i32, i32, i32
  }
  func.func @transform_1(%arg0: i32) -> (i32, i32) {
    %c0_i32 = arith.constant 0 : i32
    %c0_i32_0 = arith.constant 0 : i32
    %c0_i32_1 = arith.constant 0 : i32
    return %c0_i32, %c0_i32_0 : i32, i32
  }
  func.func @transform_2(%arg0: i32) -> (i32, i32, i32) {
    %c0_i32 = arith.constant 0 : i32
    %c0_i32_0 = arith.constant 0 : i32
    %c0_i32_1 = arith.constant 0 : i32
    return %arg0, %c0_i32, %c0_i32_0 : i32, i32, i32
  }
}

</mosaic_0001>

<llo_original>
// kernel: tpu_custom_call.1
$region0: #{tpu_custom_call.1}
  #allocation0 [shape = 'u32[]', space=smem, size = 0x4, offset = 0x4, fixed_abs, tag = 'smem constant byte address 0x4 - core index']
  #allocation1 [shape = 'u32[72,128]{1,0:T(1,128)}', space=vmem, size = 0x9000, scoped, tag = 'internal scratch']
  %s0 = inlined_call_operand.vmem [shape: f32[2,8,384], index: 0, kind: input, shape index: {}]
  %s1 = inlined_call_operand.vmem [shape: f32[384,192], index: 1, kind: input, shape index: {}]
  %s2 = inlined_call_operand.hbm [shape: f32[2,8,64], index: 2, kind: output, shape index: {}]
  %s3 = sld [smem:[#allocation0]]
  $region41: #{tpu_custom_call.1} parent=0
    _
  %s5 = ssub.s32 1, %s3
  %s6 = scalar_select 0, %s5, %s3
  $region1: #{tpu_custom_call.1} parent=0
    #allocation2 [shape = 'u8[8192]{0}', space=vmem, size = 0x2000, scoped, tag = 'output window, operand 0']
    #allocation3 [shape = 's32[2]{0}', space=sflag, size = 0x8, scoped, tag = 'scoped memory for tpu_custom_call.1']
    %7 = vsyncpa [#allocation3], 0
    %s8 = scalar_lea.sflag [#allocation3], 1
    %9 = vsyncpa %s8, 0
    loop: start=0, step=1, limit=4
    $region2: #{tpu_custom_call.1} parent=1 // loop_pre_header
      _
    $region3: #{tpu_custom_call.1} parent=1 // loop_header
      %s11 = sphi 0, %s15
      %p12 = scmp.ge.s32.totalorder %s11, 4
      %s21 = sphi 0, %s23
      %s24 = sphi 0, %s21
      %s25 = sphi 0, %s24
      %s41 = sphi 0, %s25
      %s45 = sphi 0, %s45
      %s47 = sphi 0, %s45
      %s48 = sphi 0, %s47
      %s62 = sphi 0, %s48
      %s68 = sphi 0, %s70
      %s71 = sphi 0, %s68
      %s72 = sphi 0, %s71
      %s88 = sphi 0, %s72
    $region4: #{tpu_custom_call.1} parent=1 // loop_header_branch
      %14 = sbr.rel (%p12) target = $region8
    $region5: #{tpu_custom_call.1} parent=1 // loop_body
      %s16 = ssub.s32 %s11, 1
      %s17 = ssub.s32 %s11, 2
      %s18 = sadd.s32 %s11, 1
      %s19 = ssub.s32 %s11, %s18
      %p20 = scmp.eq.s32.totalorder %s19, 0
      %s22 = sadd.s32 %s21, 1
      %s23 = scalar_select %p20, %s21, %s22
      %p26 = pneg %p20
      %p27 = scmp.eq.s32.totalorder %s11, 1
      %p28 = por %p26, %p27
      %p29 = scmp.ne.s32.totalorder %s21, %s24
      %p30 = scmp.eq.s32.totalorder %s11, 0
      %p31 = por %p29, %p30
      %p32 = scmp.ne.s32.totalorder %s21, %s24
      %p33 = scmp.eq.s32.totalorder %s16, 1
      %p34 = por %p32, %p33
      %p35 = scmp.ne.s32.totalorder %s24, %s25
      %p36 = scmp.eq.s32.totalorder %s16, 0
      %p37 = por %p35, %p36
      %p38 = scmp.ne.s32.totalorder %s24, %s25
      %p39 = scmp.eq.s32.totalorder %s17, 1
      %p40 = por %p38, %p39
      %p42 = scmp.ne.s32.totalorder %s25, %s41
      %p43 = scmp.eq.s32.totalorder %s17, 0
      %p44 = por %p42, %p43
      %s46 = sadd.s32 %s45, 1
      %p49 = scmp.eq.s32.totalorder %s11, 1
      %p50 = scmp.ne.s32.totalorder %s45, %s47
      %p51 = scmp.eq.s32.totalorder %s11, 0
      %p52 = por %p50, %p51
      %p53 = scmp.ne.s32.totalorder %s45, %s47
      %p54 = scmp.eq.s32.totalorder %s16, 1
      %p55 = por %p53, %p54
      %p56 = scmp.ne.s32.totalorder %s47, %s48
      %p57 = scmp.eq.s32.totalorder %s16, 0
      %p58 = por %p56, %p57
      %p59 = scmp.ne.s32.totalorder %s47, %s48
      %p60 = scmp.eq.s32.totalorder %s17, 1
      %p61 = por %p59, %p60
      %p63 = scmp.ne.s32.totalorder %s48, %s62
      %p64 = scmp.eq.s32.totalorder %s17, 0
      %p65 = por %p63, %p64
      %s66 = ssub.s32 %s11, %s18
      %p67 = scmp.eq.s32.totalorder %s66, 0
      %s69 = sadd.s32 %s68, 1
      %s70 = scalar_select %p67, %s68, %s69
      %p73 = pneg %p67
      %p74 = scmp.eq.s32.totalorder %s11, 1
      %p75 = por %p73, %p74
      %p76 = scmp.ne.s32.totalorder %s68, %s71
      %p77 = scmp.eq.s32.totalorder %s11, 0
      %p78 = por %p76, %p77
      %p79 = scmp.ne.s32.totalorder %s68, %s71
      %p80 = scmp.eq.s32.totalorder %s16, 1
      %p81 = por %p79, %p80
      %p82 = scmp.ne.s32.totalorder %s71, %s72
      %p83 = scmp.eq.s32.totalorder %s16, 0
      %p84 = por %p82, %p83
      %p85 = scmp.ne.s32.totalorder %s71, %s72
      %p86 = scmp.eq.s32.totalorder %s17, 1
      %p87 = por %p85, %p86
      %p89 = scmp.ne.s32.totalorder %s72, %s88
      %p90 = scmp.eq.s32.totalorder %s17, 0
      %p91 = por %p89, %p90
      %p92 = scmp.le.s32.totalorder 1, %s11
      %p93 = scmp.lt.s32.totalorder %s11, 3
      %p94 = pnand %p92, %p93
      %p95 = pneg %p94
      // Predicated region
      $region9: #{tpu_custom_call.1} parent=5 // pred_check
        _
      $region10: #{tpu_custom_call.1} parent=5 // pred_check_branch
        %97 = sbr.rel (%p94) target = $region12
      $region11: #{tpu_custom_call.1} parent=5 // pred_region
        %s98 = ssub.s32 %s11, 1
        // Predicated region
        $region13: #{tpu_custom_call.1} parent=11 // pred_check
          %p99 = pneg %p58
        $region14: #{tpu_custom_call.1} parent=11 // pred_check_branch
          %101 = sbr.rel (%p99) target = $region16
        $region15: #{tpu_custom_call.1} parent=11 // pred_region
          _
        $region16: #{tpu_custom_call.1} parent=11 // pred_fallthru
          _
      $region12: #{tpu_custom_call.1} parent=5 // pred_fallthru
        _
      %p102 = scmp.lt.s32.totalorder %s11, 2
      // Predicated region
      $region17: #{tpu_custom_call.1} parent=5 // pred_check
        %p103 = pneg %p102
      $region18: #{tpu_custom_call.1} parent=5 // pred_check_branch
        %105 = sbr.rel (%p103) target = $region20
      $region19: #{tpu_custom_call.1} parent=5 // pred_region
        // Predicated region
        $region21: #{tpu_custom_call.1} parent=19 // pred_check
          %p106 = pneg %p31
        $region22: #{tpu_custom_call.1} parent=19 // pred_check_branch
          %108 = sbr.rel (%p106) target = $region24
        $region23: #{tpu_custom_call.1} parent=19 // pred_region
          %p109 = scmp.lt.s32.totalorder %s11, 1
          %s110 = scalar_select %p109, %s11, 1
          %s111 = smul.addr %s110, 3
          %s112 = smul.addr %s111, 8
          %s113 = scalar_lea.vmem %s0, %s112
        $region24: #{tpu_custom_call.1} parent=19 // pred_fallthru
          _
      $region20: #{tpu_custom_call.1} parent=5 // pred_fallthru
        _
      %p114 = scmp.le.s32.totalorder 1, %s11
      %p115 = scmp.lt.s32.totalorder %s11, 3
      %p116 = pnand %p114, %p115
      %p117 = pneg %p116
      // Predicated region
      $region25: #{tpu_custom_call.1} parent=5 // pred_check
        _
      $region26: #{tpu_custom_call.1} parent=5 // pred_check_branch
        %119 = sbr.rel (%p116) target = $region28
      $region27: #{tpu_custom_call.1} parent=5 // pred_region
        %s120 = ssub.s32 %s11, 1
        %p121 = scmp.lt.s32.totalorder %s16, 1
        %s122 = scalar_select %p121, %s16, 1
        %s123 = smul.addr %s122, 3
        %s124 = smul.addr %s123, 8
        %s125 = scalar_lea.vmem %s0, %s124
        %p126 = pneg %p37
        %p127 = pneg %p34
        %p128 = pneg %p58
        %p129 = pneg %p55
        %p130 = pneg %p84
        %p131 = pneg %p81
        %s132 = sand.u32 %s71, 1
        %s133 = scalar_lea.sflag [#allocation3], %s132
        %s134 = sand.u32 %s71, 1
        %s135 = smul.addr %s134, 8
        %s136 = scalar_lea.vmem [#allocation2], %s135
        %p137 = scmp.lt.s32.totalorder %s16, 1
        %s138 = scalar_select %p137, %s16, 1
        %s139 = smul.addr %s138, 3
        %s140 = smul.addr %s139, 8
        %s141 = scalar_lea.vmem %s0, %s140
        %v143 = vld [vmem:[%s141] sm:$0xff]
        %v144 = vld [vmem:[%s141 + $0x8] sm:$0xff]
        %v145 = vld [vmem:[%s141 + $0x10] sm:$0xff]
        %v146 = vpack.c.bf16 %v143, %v143
        %v147 = vpack.c.bf16 %v144, %v144
        %v148 = vpack.c.bf16 %v145, %v145
        %v149 = vld [vmem:[%s1] sm:$0xff]
        %v150 = vld [vmem:[%s1 + $0x8] sm:$0xff]
        %v151 = vld [vmem:[%s1 + $0x10] sm:$0xff]
        %v152 = vld [vmem:[%s1 + $0x18] sm:$0xff]
        %v153 = vld [vmem:[%s1 + $0x20] sm:$0xff]
        %v154 = vld [vmem:[%s1 + $0x28] sm:$0xff]
        %v155 = vld [vmem:[%s1 + $0x30] sm:$0xff]
        %v156 = vld [vmem:[%s1 + $0x38] sm:$0xff]
        %v157 = vld [vmem:[%s1 + $0x40] sm:$0xff]
        %v158 = vld [vmem:[%s1 + $0x48] sm:$0xff]
        %v159 = vld [vmem:[%s1 + $0x50] sm:$0xff]
        %v160 = vld [vmem:[%s1 + $0x58] sm:$0xff]
        %v161 = vld [vmem:[%s1 + $0x60] sm:$0xff]
        %v162 = vld [vmem:[%s1 + $0x68] sm:$0xff]
        %v163 = vld [vmem:[%s1 + $0x70] sm:$0xff]
        %v164 = vld [vmem:[%s1 + $0x78] sm:$0xff]
        %v165 = vld [vmem:[%s1 + $0x80] sm:$0xff]
        %v166 = vld [vmem:[%s1 + $0x88] sm:$0xff]
        %v167 = vld [vmem:[%s1 + $0x90] sm:$0xff]
        %v168 = vld [vmem:[%s1 + $0x98] sm:$0xff]
        %v169 = vld [vmem:[%s1 + $0xa0] sm:$0xff]
        %v170 = vld [vmem:[%s1 + $0xa8] sm:$0xff]
        %v171 = vld [vmem:[%s1 + $0xb0] sm:$0xff]
        %v172 = vld [vmem:[%s1 + $0xb8] sm:$0xff]
        %v173 = vld [vmem:[%s1 + $0xc0] sm:$0xff]
        %v174 = vld [vmem:[%s1 + $0xc8] sm:$0xff]
        %v175 = vld [vmem:[%s1 + $0xd0] sm:$0xff]
        %v176 = vld [vmem:[%s1 + $0xd8] sm:$0xff]
        %v177 = vld [vmem:[%s1 + $0xe0] sm:$0xff]
        %v178 = vld [vmem:[%s1 + $0xe8] sm:$0xff]
        %v179 = vld [vmem:[%s1 + $0xf0] sm:$0xff]
        %v180 = vld [vmem:[%s1 + $0xf8] sm:$0xff]
        %v181 = vld [vmem:[%s1 + $0x100] sm:$0xff]
        %v182 = vld [vmem:[%s1 + $0x108] sm:$0xff]
        %v183 = vld [vmem:[%s1 + $0x110] sm:$0xff]
        %v184 = vld [vmem:[%s1 + $0x118] sm:$0xff]
        %v185 = vld [vmem:[%s1 + $0x120] sm:$0xff]
        %v186 = vld [vmem:[%s1 + $0x128] sm:$0xff]
        %v187 = vld [vmem:[%s1 + $0x130] sm:$0xff]
        %v188 = vld [vmem:[%s1 + $0x138] sm:$0xff]
        %v189 = vld [vmem:[%s1 + $0x140] sm:$0xff]
        %v190 = vld [vmem:[%s1 + $0x148] sm:$0xff]
        %v191 = vld [vmem:[%s1 + $0x150] sm:$0xff]
        %v192 = vld [vmem:[%s1 + $0x158] sm:$0xff]
        %v193 = vld [vmem:[%s1 + $0x160] sm:$0xff]
        %v194 = vld [vmem:[%s1 + $0x168] sm:$0xff]
        %v195 = vld [vmem:[%s1 + $0x170] sm:$0xff]
        %v196 = vld [vmem:[%s1 + $0x178] sm:$0xff]
        %v197 = vld [vmem:[%s1 + $0x180] sm:$0xff]
        %v198 = vld [vmem:[%s1 + $0x188] sm:$0xff]
        %v199 = vld [vmem:[%s1 + $0x190] sm:$0xff]
        %v200 = vld [vmem:[%s1 + $0x198] sm:$0xff]
        %v201 = vld [vmem:[%s1 + $0x1a0] sm:$0xff]
        %v202 = vld [vmem:[%s1 + $0x1a8] sm:$0xff]
        %v203 = vld [vmem:[%s1 + $0x1b0] sm:$0xff]
        %v204 = vld [vmem:[%s1 + $0x1b8] sm:$0xff]
        %v205 = vld [vmem:[%s1 + $0x1c0] sm:$0xff]
        %v206 = vld [vmem:[%s1 + $0x1c8] sm:$0xff]
        %v207 = vld [vmem:[%s1 + $0x1d0] sm:$0xff]
        %v208 = vld [vmem:[%s1 + $0x1d8] sm:$0xff]
        %v209 = vld [vmem:[%s1 + $0x1e0] sm:$0xff]
        %v210 = vld [vmem:[%s1 + $0x1e8] sm:$0xff]
        %v211 = vld [vmem:[%s1 + $0x1f0] sm:$0xff]
        %v212 = vld [vmem:[%s1 + $0x1f8] sm:$0xff]
        %v213 = vld [vmem:[%s1 + $0x200] sm:$0xff]
        %v214 = vld [vmem:[%s1 + $0x208] sm:$0xff]
        %v215 = vld [vmem:[%s1 + $0x210] sm:$0xff]
        %v216 = vld [vmem:[%s1 + $0x218] sm:$0xff]
        %v217 = vld [vmem:[%s1 + $0x220] sm:$0xff]
        %v218 = vld [vmem:[%s1 + $0x228] sm:$0xff]
        %v219 = vld [vmem:[%s1 + $0x230] sm:$0xff]
        %v220 = vld [vmem:[%s1 + $0x238] sm:$0xff]
        %v221 = vld [vmem:[%s1 + $0x240] sm:$0xff]
        %v222 = vld [vmem:[%s1 + $0x248] sm:$0xff]
        %v223 = vld [vmem:[%s1 + $0x250] sm:$0xff]
        %v224 = vld [vmem:[%s1 + $0x258] sm:$0xff]
        %v225 = vld [vmem:[%s1 + $0x260] sm:$0xff]
        %v226 = vld [vmem:[%s1 + $0x268] sm:$0xff]
        %v227 = vld [vmem:[%s1 + $0x270] sm:$0xff]
        %v228 = vld [vmem:[%s1 + $0x278] sm:$0xff]
        %v229 = vld [vmem:[%s1 + $0x280] sm:$0xff]
        %v230 = vld [vmem:[%s1 + $0x288] sm:$0xff]
        %v231 = vld [vmem:[%s1 + $0x290] sm:$0xff]
        %v232 = vld [vmem:[%s1 + $0x298] sm:$0xff]
        %v233 = vld [vmem:[%s1 + $0x2a0] sm:$0xff]
        %v234 = vld [vmem:[%s1 + $0x2a8] sm:$0xff]
        %v235 = vld [vmem:[%s1 + $0x2b0] sm:$0xff]
        %v236 = vld [vmem:[%s1 + $0x2b8] sm:$0xff]
        %v237 = vld [vmem:[%s1 + $0x2c0] sm:$0xff]
        %v238 = vld [vmem:[%s1 + $0x2c8] sm:$0xff]
        %v239 = vld [vmem:[%s1 + $0x2d0] sm:$0xff]
        %v240 = vld [vmem:[%s1 + $0x2d8] sm:$0xff]
        %v241 = vld [vmem:[%s1 + $0x2e0] sm:$0xff]
        %v242 = vld [vmem:[%s1 + $0x2e8] sm:$0xff]
        %v243 = vld [vmem:[%s1 + $0x2f0] sm:$0xff]
        %v244 = vld [vmem:[%s1 + $0x2f8] sm:$0xff]
        %v245 = vpack.c.bf16 %v151, %v149
        %v246 = vpack.c.bf16 %v152, %v150
        %v247 = vpack.c.bf16 %v155, %v153
        %v248 = vpack.c.bf16 %v156, %v154
        %v249 = vpack.c.bf16 %v159, %v157
        %v250 = vpack.c.bf16 %v160, %v158
        %v251 = vpack.c.bf16 %v163, %v161
        %v252 = vpack.c.bf16 %v164, %v162
        %v253 = vpack.c.bf16 %v167, %v165
        %v254 = vpack.c.bf16 %v168, %v166
        %v255 = vpack.c.bf16 %v171, %v169
        %v256 = vpack.c.bf16 %v172, %v170
        %v257 = vpack.c.bf16 %v175, %v173
        %v258 = vpack.c.bf16 %v176, %v174
        %v259 = vpack.c.bf16 %v179, %v177
        %v260 = vpack.c.bf16 %v180, %v178
        %v261 = vpack.c.bf16 %v183, %v181
        %v262 = vpack.c.bf16 %v184, %v182
        %v263 = vpack.c.bf16 %v187, %v185
        %v264 = vpack.c.bf16 %v188, %v186
        %v265 = vpack.c.bf16 %v191, %v189
        %v266 = vpack.c.bf16 %v192, %v190
        %v267 = vpack.c.bf16 %v195, %v193
        %v268 = vpack.c.bf16 %v196, %v194
        %v269 = vpack.c.bf16 %v199, %v197
        %v270 = vpack.c.bf16 %v200, %v198
        %v271 = vpack.c.bf16 %v203, %v201
        %v272 = vpack.c.bf16 %v204, %v202
        %v273 = vpack.c.bf16 %v207, %v205
        %v274 = vpack.c.bf16 %v208, %v206
        %v275 = vpack.c.bf16 %v211, %v209
        %v276 = vpack.c.bf16 %v212, %v210
        %v277 = vpack.c.bf16 %v215, %v213
        %v278 = vpack.c.bf16 %v216, %v214
        %v279 = vpack.c.bf16 %v219, %v217
        %v280 = vpack.c.bf16 %v220, %v218
        %v281 = vpack.c.bf16 %v223, %v221
        %v282 = vpack.c.bf16 %v224, %v222
        %v283 = vpack.c.bf16 %v227, %v225
        %v284 = vpack.c.bf16 %v228, %v226
        %v285 = vpack.c.bf16 %v231, %v229
        %v286 = vpack.c.bf16 %v232, %v230
        %v287 = vpack.c.bf16 %v235, %v233
        %v288 = vpack.c.bf16 %v236, %v234
        %v289 = vpack.c.bf16 %v239, %v237
        %v290 = vpack.c.bf16 %v240, %v238
        %v291 = vpack.c.bf16 %v243, %v241
        %v292 = vpack.c.bf16 %v244, %v242
        %293 = vmatpush.bf16.msra.mxu0 %v259
        %294 = vmatpush.bf16.msra.mxu0 %v257
        %295 = vmatpush.bf16.msra.mxu0 %v255
        %296 = vmatpush.bf16.msra.mxu0 %v253
        %297 = vmatpush.bf16.msra.mxu0 %v251
        %298 = vmatpush.bf16.msra.mxu0 %v249
        %299 = vmatpush.bf16.msra.mxu0 %v247
        %300 = vmatpush.bf16.msra.mxu0 %v245
        %301 = vmatmul.bf16.gmra.mxu0 %v146
        %v302 = vpop.f32.mrf.mxu0
        %v303 = vadd.f32 0.0, %v302
        %v304 = vpop.f32.mrf.mxu0
        %305 = vdwg.mxu0
        %306 = vmatpush.bf16.msra.mxu0 %v275
        %307 = vmatpush.bf16.msra.mxu0 %v273
        %308 = vmatpush.bf16.msra.mxu0 %v271
        %309 = vmatpush.bf16.msra.mxu0 %v269
        %310 = vmatpush.bf16.msra.mxu0 %v267
        %311 = vmatpush.bf16.msra.mxu0 %v265
        %312 = vmatpush.bf16.msra.mxu0 %v263
        %313 = vmatpush.bf16.msra.mxu0 %v261
        %314 = vmatmul.bf16.gmra.mxu0 %v147
        %v315 = vpop.f32.mrf.mxu0
        %v316 = vadd.f32 %v303, %v315
        %v317 = vpop.f32.mrf.mxu0
        %318 = vdwg.mxu0
        %319 = vmatpush.bf16.msra.mxu0 %v291
        %320 = vmatpush.bf16.msra.mxu0 %v289
        %321 = vmatpush.bf16.msra.mxu0 %v287
        %322 = vmatpush.bf16.msra.mxu0 %v285
        %323 = vmatpush.bf16.msra.mxu0 %v283
        %324 = vmatpush.bf16.msra.mxu0 %v281
        %325 = vmatpush.bf16.msra.mxu0 %v279
        %326 = vmatpush.bf16.msra.mxu0 %v277
        %327 = vmatmul.bf16.gmra.mxu0 %v148
        %v328 = vpop.f32.mrf.mxu0
        %v329 = vadd.f32 %v316, %v328
        %v330 = vpop.f32.mrf.mxu0
        %331 = vdwg.mxu0
        %332 = vmatpush.bf16.msra.mxu0 %v260
        %333 = vmatpush.bf16.msra.mxu0 %v258
        %334 = vmatpush.bf16.msra.mxu0 %v256
        %335 = vmatpush.bf16.msra.mxu0 %v254
        %336 = vmatpush.bf16.msra.mxu0 %v252
        %337 = vmatpush.bf16.msra.mxu0 %v250
        %338 = vmatpush.bf16.msra.mxu0 %v248
        %339 = vmatpush.bf16.msra.mxu0 %v246
        %340 = vmatmul.bf16.gmra.mxu0 %v146
        %v341 = vpop.f32.mrf.mxu0
        %v342 = vadd.f32 0.0, %v341
        %v343 = vpop.f32.mrf.mxu0
        %344 = vdwg.mxu0
        %345 = vmatpush.bf16.msra.mxu0 %v276
        %346 = vmatpush.bf16.msra.mxu0 %v274
        %347 = vmatpush.bf16.msra.mxu0 %v272
        %348 = vmatpush.bf16.msra.mxu0 %v270
        %349 = vmatpush.bf16.msra.mxu0 %v268
        %350 = vmatpush.bf16.msra.mxu0 %v266
        %351 = vmatpush.bf16.msra.mxu0 %v264
        %352 = vmatpush.bf16.msra.mxu0 %v262
        %353 = vmatmul.bf16.gmra.mxu0 %v147
        %v354 = vpop.f32.mrf.mxu0
        %v355 = vadd.f32 %v342, %v354
        %v356 = vpop.f32.mrf.mxu0
        %357 = vdwg.mxu0
        %358 = vmatpush.bf16.msra.mxu0 %v292
        %359 = vmatpush.bf16.msra.mxu0 %v290
        %360 = vmatpush.bf16.msra.mxu0 %v288
        %361 = vmatpush.bf16.msra.mxu0 %v286
        %362 = vmatpush.bf16.msra.mxu0 %v284
        %363 = vmatpush.bf16.msra.mxu0 %v282
        %364 = vmatpush.bf16.msra.mxu0 %v280
        %365 = vmatpush.bf16.msra.mxu0 %v278
        %366 = vmatmul.bf16.gmra.mxu0 %v148
        %v367 = vpop.f32.mrf.mxu0
        %v368 = vadd.f32 %v355, %v367
        %v369 = vpop.f32.mrf.mxu0
        %370 = vdwg.mxu0
        %v371 = vmul.f32 %v329, 0.05103104
        %v372 = vpack.c.bf16 %v371, %v371
        %v373 = vpack.c.bf16 %v329, %v329
        %v375 = vunpack.c.l.b16 %v372
        %v376 = vpack.c.b16 %v375, %v375
        %377 = vrot.lane.b32.xlu0 %v376, 64
        %v378 = vpop.permute.xlu0 %377
        %vm379 = vcmask 523264
        %v381 = vsel %vm379, %v378, 0
        %v384 = vsel %vm379, %v373, 0
        %386 = vmatpush.bf16.xpose.msra.mxu0 0
        %387 = vmatpush.bf16.xpose.msra.mxu0 0
        %388 = vmatpush.bf16.xpose.msra.mxu0 0
        %389 = vmatpush.bf16.xpose.msra.mxu0 0
        %390 = vmatpush.bf16.xpose.msra.mxu0 0
        %391 = vmatpush.bf16.xpose.msra.mxu0 0
        %392 = vmatpush.bf16.xpose.msra.mxu0 0
        %393 = vmatpush.bf16.xpose.msra.mxu0 %v384
        %394 = vmatmul.bf16.gmra.mxu0 %v381
        %v395 = vpop.f32.mrf.mxu0
        %v396 = vadd.f32 0.0, %v395
        %v397 = vpop.f32.mrf.mxu0
        %398 = vdwg.mxu0
        %v399 = vlaneseq
        %v400 = vshrl.u32 %v399, 7
        %v401 = vlaneseq
        %v402 = vand.u32 %v401, 127
        %vm403 = vcmp.le.s32.totalorder %v402, %v400
        %v404 = vsel %vm403, %v396, -inf
        %vm405 = vcmask 64512
        %v406 = vsel %vm405, %v404, -inf
        %407 = vmax.xlane.f32.xlu0 %v406
        %v408 = vpop.xlane.xlu0 %407
        %v409 = vsub.f32 %v404, %v408
        %v410 = vmul.f32 %v409, 1.442695
        %v411 = vpow.pop %v410
        %v412 = vsel %vm405, %v411, 0.0
        %413 = vadd.xlane.f32.xlu0 %v412
        %v414 = vpop.xlane.xlu0 %413
        %v415 = vrcp.pop %v414
        %v416 = vmul.f32 %v411, %v415
        %v417 = vpack.c.bf16 %v416, %v416
        %v418 = vpack.c.bf16 %v368, %v368
        %v420 = vsel %vm405, %v417, 0
        %vm422 = vcmask 1043456
        %v424 = vsel %vm422, %v418, 0
        %426 = vmatpush.bf16.msra.mxu0 0
        %427 = vmatpush.bf16.msra.mxu0 0
        %428 = vmatpush.bf16.msra.mxu0 0
        %429 = vmatpush.bf16.msra.mxu0 0
        %430 = vmatpush.bf16.msra.mxu0 0
        %431 = vmatpush.bf16.msra.mxu0 0
        %432 = vmatpush.bf16.msra.mxu0 0
        %433 = vmatpush.bf16.msra.mxu0 %v424
        %434 = vmatmul.bf16.gmra.mxu0 %v420
        %v435 = vpop.f32.mrf.mxu0
        %v436 = vadd.f32 0.0, %v435
        %v437 = vpop.f32.mrf.mxu0
        %438 = vdwg.mxu0
        %439 = vst.msk [vmem:[%s136] sm:$0xff] %vm379, %v436
        %s440 = sand.u32 %s71, 1
        %s441 = scalar_lea.sflag [#allocation3], %s440
        %s442 = sand.u32 %s71, 1
        %s443 = smul.addr %s442, 8
        %s444 = scalar_lea.vmem [#allocation2], %s443
        // Predicated region
        $region29: #{tpu_custom_call.1} parent=27 // pred_check
          %p445 = pneg %p81
        $region30: #{tpu_custom_call.1} parent=27 // pred_check_branch
          %447 = sbr.rel (%p445) target = $region32
        $region31: #{tpu_custom_call.1} parent=27 // pred_region
          %449 = vsyncadd %s441, 0
          %s450 = smul.addr %s16, 8
          %s451 = scalar_lea.hbm %s2, %s450
          %s453 = sshll.u32 %s444, 4
          %s454 = int_to_ptr.vmem [resolvable:$true] %s453
          %s455 = sshll.u32 %s451, 4
          %s456 = int_to_ptr.hbm [resolvable:$true] %s455
          %458 = dma.vmem_to_hbm [thread:$0]  %s454, 128, %s456, %s441
        $region32: #{tpu_custom_call.1} parent=27 // pred_fallthru
          _
      $region28: #{tpu_custom_call.1} parent=5 // pred_fallthru
        _
      %p459 = scmp.le.s32.totalorder 2, %s11
      // Predicated region
      $region33: #{tpu_custom_call.1} parent=5 // pred_check
        %p460 = pneg %p459
      $region34: #{tpu_custom_call.1} parent=5 // pred_check_branch
        %462 = sbr.rel (%p460) target = $region36
      $region35: #{tpu_custom_call.1} parent=5 // pred_region
        %s463 = ssub.s32 %s11, 2
        // Predicated region
        $region37: #{tpu_custom_call.1} parent=35 // pred_check
          %p464 = pneg %p87
        $region38: #{tpu_custom_call.1} parent=35 // pred_check_branch
          %466 = sbr.rel (%p464) target = $region40
        $region39: #{tpu_custom_call.1} parent=35 // pred_region
          %s467 = sand.u32 %s72, 1
          %s468 = scalar_lea.sflag [#allocation3], %s467
          %s469 = sand.u32 %s72, 1
          %s470 = smul.addr %s469, 8
          %s471 = scalar_lea.vmem [#allocation2], %s470
          %473 = dma.done %s468, 128
        $region40: #{tpu_custom_call.1} parent=35 // pred_fallthru
          _
      $region36: #{tpu_custom_call.1} parent=5 // pred_fallthru
        _
    $region6: #{tpu_custom_call.1} parent=1 // loop_footer
      %s15 = sadd.s32 1, %s11
    $region7: #{tpu_custom_call.1} parent=1 // loop_footer_branch
      %10 = sbr.rel target = $region3
    $region8: #{tpu_custom_call.1} parent=1 // loop_exit
      _
    %474 = vsyncpa [#allocation3], 1
    %s475 = scalar_lea.sflag [#allocation3], 1
    %476 = vsyncpa %s475, 1

</llo_original>
